<compile_context>
chip_gen: v6e
topology: v6e:2x2x1
jax: 0.10.0
libtpu: 0.0.40
codegen_flags: <defaults>
</compile_context>

<pallas_src>
import numpy as np
import jax
import jax.numpy as jnp
from jax import lax
from jax.experimental import pallas as pl
from jax.experimental.pallas import tpu as pltpu

EPS = 1e-5
STEPS = 4
MULTIPLIER = 4


# ----------------------------------------------------------------------------
# static (trace-time) helpers — the mask is a numpy array, exactly like torch
# ----------------------------------------------------------------------------
def _active_prims(mask_row):
    return [int(p) for p in np.nonzero(np.asarray(mask_row))[0]]


def _flatten_edge_params(mask, edge_params):
    """Pack per-edge conv weights into two stacked channel-major lists.

    dws[i]: (C, 5) depthwise taps (zero-padded to 5 taps, channel-major).
    pws[i]: (C_out, C_in) pointwise weights (already transposed).
    slots[(edge, prim)][name] -> index into dws / pws.
    """
    dws, pws, slots = [], [], {}
    for e in range(mask.shape[0]):
        for prim in _active_prims(mask[e]):
            if prim in (4, 5):
                pairs = (("dw1", "pw1"), ("dw2", "pw2"))
            elif prim in (6, 7):
                pairs = (("dw", "pw"),)
            else:
                continue
            d = {}
            for dw_nm, pw_nm in pairs:
                dw = edge_params[e][prim][dw_nm]                 # (K, 1, C)
                K = dw.shape[0]
                d[dw_nm] = len(dws)
                dws.append(jnp.pad(jnp.transpose(dw[:, 0, :]),
                                   ((0, 0), (0, 5 - K))))        # (C, 5)
                d[pw_nm] = len(pws)
                pws.append(jnp.transpose(edge_params[e][prim][pw_nm]))  # (C, C)
            slots[(e, prim)] = d
    return dws, pws, slots


# ----------------------------------------------------------------------------
# one-time probe of pltpu.roll's shift convention (robust across jax versions)
# ----------------------------------------------------------------------------
_ROLL_LIKE_JNP = None


def _roll_like_jnp_roll():
    global _ROLL_LIKE_JNP
    if _ROLL_LIKE_JNP is None:
        def probe(x_ref, o_ref):
            o_ref[...] = pltpu.roll(x_ref[...], 1, axis=1)

        x = jnp.broadcast_to(jnp.arange(128, dtype=jnp.float32), (8, 128))
        y = pl.pallas_call(
            probe, out_shape=jax.ShapeDtypeStruct((8, 128), jnp.float32))(x)
        # jnp.roll(x, 1)[..., 0] == 127 ; the opposite convention gives 1.
        _ROLL_LIKE_JNP = bool(float(y[0, 0]) == 127.0)
    return _ROLL_LIKE_JNP


# ----------------------------------------------------------------------------
# The fused cell kernel (built per static mask / shapes)
# ----------------------------------------------------------------------------
def _build_cell_kernel(mask, slots, N, L, C, roll_like_jnp):
    R = N * L
    inv_r = 1.0 / float(R)
    sgn = -1 if roll_like_jnp else 1          # roll amount so y[r] = x[r + off]

    def kernel(s0_ref, s1_ref, pre0_ref, pre1_ref, dw_ref, pw_ref, out_ref):
        # ---- constants hoisted once (JAX does not CSE broadcast/iota) ----
        lane = lax.broadcasted_iota(jnp.int32, (C, R), 1)
        pos = lane
        for n in range(1, N):                 # position of each lane within its image
            pos = jnp.where(lane >= n * L, pos - L, pos)
        avg_inv = jnp.where((pos == 0) | (pos == L - 1), 0.5, 1.0 / 3.0)
        valid_cache = {}

        def valid(off):
            if off not in valid_cache:
                valid_cache[off] = (pos + off >= 0) & (pos + off < L)
            return valid_cache[off]

        def shift_l(x, off, fill):
            # y[:, n*L+l] = x[:, n*L+l+off] if 0 <= l+off < L else fill.
            # pltpu.roll is a lane rotation (XLU slot); cross-image wrap is
            # masked by the hoisted validity mask.
            if off == 0:
                return x
            y = pltpu.roll(x, (sgn * off) % R, axis=1)
            return jnp.where(valid(off), y, fill)

        def bn(y):
            # train-mode BatchNorm1d(affine=False): per-channel stats over (N, L),
            # biased variance, one pass (sum + sum-of-squares), var clamped >= 0.
            s = jnp.sum(y, axis=1, keepdims=True)
            ss = jnp.sum(y * y, axis=1, keepdims=True)
            mean = s * inv_r
            var = jnp.maximum(ss * inv_r - mean * mean, 0.0)
            return (y - mean) * lax.rsqrt(var + EPS)

        def relu_pw_bn(x, w_ref):
            # ReLU -> 1x1 conv (channel matmul) -> BN, channel-major (C, R).
            y = jnp.dot(w_ref[...], jnp.maximum(x, 0.0),
                        preferred_element_type=jnp.float32)
            return bn(y)

        def dw_pw_bn(xr, dw_idx, pw_idx, K, dil):
            # depthwise conv (K taps, dilation dil, zero pad) -> 1x1 conv -> BN.
            p = dil * (K - 1) // 2
            dwt = dw_ref[dw_idx]                              # (C, 5) packed taps
            acc = shift_l(xr, -p, 0.0) * dwt[:, 0:1]
            for t in range(1, K):
                acc = acc + shift_l(xr, t * dil - p, 0.0) * dwt[:, t:t + 1]
            y = jnp.dot(pw_ref[pw_idx], acc, preferred_element_type=jnp.float32)
            return bn(y)

        def pool3_bn(x, mode):
            # pool(k=3, stride=1, pad=1) + the extra BN that MixedOp appends.
            if mode == "max":
                y = jnp.maximum(jnp.maximum(shift_l(x, -1, -jnp.inf), x),
                                shift_l(x, 1, -jnp.inf))
            else:       # avg, count_include_pad=False (DARTS convention)
                y = (shift_l(x, -1, 0.0) + x + shift_l(x, 1, 0.0)) * avg_inv
            return bn(y)

        def apply_prim(prim, x, xr, e):
            if prim == 0:                          # 'none' -> contributes zeros
                return None
            if prim == 1:
                return pool3_bn(x, "max")
            if prim == 2:
                return pool3_bn(x, "avg")
            if prim == 3:                          # skip_connect, stride 1
                return x
            if prim in (4, 5):                     # sep_conv: 2 stacked blocks, fused
                k = 3 if prim == 4 else 5
                sl = slots[(e, prim)]
                y = dw_pw_bn(xr, sl["dw1"], sl["pw1"], k, 1)
                return dw_pw_bn(jnp.maximum(y, 0.0), sl["dw2"], sl["pw2"], k, 1)
            if prim in (6, 7):                     # dil_conv, dilation 2
                k = 3 if prim == 6 else 5
                sl = slots[(e, prim)]
                return dw_pw_bn(xr, sl["dw"], sl["pw"], k, 2)
            raise ValueError(prim)

        # ---- whole cell, every state resident on-chip ----
        states = [relu_pw_bn(s0_ref[...], pre0_ref),
                  relu_pw_bn(s1_ref[...], pre1_ref)]
        offset = 0
        for _ in range(STEPS):
            acc = None
            for j in range(len(states)):
                e = offset + j
                prims = _active_prims(mask[e])
                if not prims:
                    continue
                x = states[j]
                xr = jnp.maximum(x, 0.0)   # shared ReLU for conv prims on this edge
                for prim in prims:
                    r = apply_prim(prim, x, xr, e)
                    if r is not None:
                        acc = r if acc is None else acc + r
            offset += len(states)
            states.append(acc if acc is not None
                          else jnp.zeros((C, R), jnp.float32))

        # single full-width store of the 4 output states (lane-dense when R>=128)
        out_ref[...] = jnp.concatenate(states[-MULTIPLIER:], axis=0)

    return kernel


def _full_spec(shape):
    nd = len(shape)
    return pl.BlockSpec(shape, lambda i, _nd=nd: (0,) * _nd)


def cnn_cell_forward(s0_ncl, s1_ncl, mask_cnn, params):
    """Forward of CNN_Cell_search (steps=4, multiplier=4, no reduction).

    s0_ncl: (N, C_pp, L), s1_ncl: (N, C_p, L) in torch NCL layout.
    Returns (N, multiplier*C, L).
    """
    mask = np.asarray(mask_cnn)
    N, C_pp, L = s0_ncl.shape
    C_p = s1_ncl.shape[1]
    C = params["pre0_w"].shape[1]
    R = N * L
    assert L >= 2, "pool_3 path requires L >= 2"   # TODO(synk): mask-guard L == 1

    dws, pws, slots = _flatten_edge_params(mask, params["edges"])
    dw_stack = jnp.stack(dws) if dws else jnp.zeros((1, C, 5), jnp.float32)
    pw_stack = jnp.stack(pws) if pws else jnp.zeros((1, C, C), jnp.float32)

    # channel-major layout (lanes = flattened N*L): wrapper-side plumbing only.
    s0_cr = jnp.transpose(jnp.asarray(s0_ncl, jnp.float32), (1, 0, 2)).reshape(C_pp, R)
    s1_cr = jnp.transpose(jnp.asarray(s1_ncl, jnp.float32), (1, 0, 2)).reshape(C_p, R)
    pre0_wT = jnp.transpose(params["pre0_w"])
    pre1_wT = jnp.transpose(params["pre1_w"])

    kernel = _build_cell_kernel(mask, slots, N, L, C, _roll_like_jnp_roll())
    inputs = [s0_cr, s1_cr, pre0_wT, pre1_wT, dw_stack, pw_stack]

    out = pl.pallas_call(
        kernel,
        grid=(1,),
        in_specs=[_full_spec(x.shape) for x in inputs],
        out_specs=pl.BlockSpec((MULTIPLIER * C, R), lambda i: (0, 0)),
        out_shape=jax.ShapeDtypeStruct((MULTIPLIER * C, R), jnp.float32),
        compiler_params=pltpu.CompilerParams(
            dimension_semantics=("arbitrary",)),
    )(*inputs)

    # layout plumbing back to torch's NCL (done once, outside the kernel)
    return jnp.transpose(out.reshape(MULTIPLIER * C, N, L), (1, 0, 2))


# ----------------------------------------------------------------------------
# Deterministic parameter init (same layout as the torch module would hold)
# ----------------------------------------------------------------------------
def init_params(key, mask_cnn, C_pp, C_p, C):
    params = {}
    key, k0, k1 = jax.random.split(key, 3)
    params["pre0_w"] = 0.1 * jax.random.normal(k0, (C_pp, C), jnp.float32)
    params["pre1_w"] = 0.1 * jax.random.normal(k1, (C_p, C), jnp.float32)
    edges = []
    for e in range(mask_cnn.shape[0]):
        ep = {}
        for prim in _active_prims(mask_cnn[e]):
            if prim in (4, 5):
                k = 3 if prim == 4 else 5
                key, a, b, c, d = jax.random.split(key, 5)
                ep[prim] = {
                    "dw1": 0.1 * jax.random.normal(a, (k, 1, C), jnp.float32),
                    "pw1": 0.1 * jax.random.normal(b, (C, C), jnp.float32),
                    "dw2": 0.1 * jax.random.normal(c, (k, 1, C), jnp.float32),
                    "pw2": 0.1 * jax.random.normal(d, (C, C), jnp.float32),
                }
            elif prim in (6, 7):
                k = 3 if prim == 6 else 5
                key, a, b = jax.random.split(key, 3)
                ep[prim] = {
                    "dw": 0.1 * jax.random.normal(a, (k, 1, C), jnp.float32),
                    "pw": 0.1 * jax.random.normal(b, (C, C), jnp.float32),
                }
        edges.append(ep)
    params["edges"] = edges
    return params


# ----------------------------------------------------------------------------
# Pure-JAX reference (HIGHEST-precision matmuls) for a correctness self-check
# ----------------------------------------------------------------------------
def _ref_bn_nlc(y):
    mean = jnp.mean(y, axis=(0, 1), keepdims=True)
    var = jnp.mean(jnp.square(y - mean), axis=(0, 1), keepdims=True)
    return (y - mean) / jnp.sqrt(var + EPS)


def _ref_relu_dw_pw_bn(x, dw, pw, K, dil):
    L = x.shape[1]
    p = dil * (K - 1) // 2
    xp = jnp.pad(jnp.maximum(x, 0.0), ((0, 0), (p, p), (0, 0)))
    acc = sum(xp[:, t * dil:t * dil + L, :] * dw[t] for t in range(K))
    return _ref_bn_nlc(jnp.einsum("nlc,cd->nld", acc, pw, precision="highest"))


def _ref_pool3_bn(x, mode):
    L = x.shape[1]
    if mode == "max":
        xp = jnp.pad(x, ((0, 0), (1, 1), (0, 0)), constant_values=float("-inf"))
        y = jnp.maximum(jnp.maximum(xp[:, 0:L], xp[:, 1:L + 1]), xp[:, 2:L + 2])
    else:
        xp = jnp.pad(x, ((0, 0), (1, 1), (0, 0)))
        cnt = jnp.full((L,), 3.0).at[0].set(2.0).at[L - 1].set(2.0)
        y = (xp[:, 0:L] + xp[:, 1:L + 1] + xp[:, 2:L + 2]) / cnt[None, :, None]
    return _ref_bn_nlc(y)


def _ref_cell_forward(s0_ncl, s1_ncl, mask, params):
    def pre(x_ncl, w):
        x = jnp.maximum(jnp.transpose(x_ncl, (0, 2, 1)), 0.0)
        return _ref_bn_nlc(jnp.einsum("nlc,cd->nld", x, w, precision="highest"))

    mask = np.asarray(mask)
    states = [pre(s0_ncl, params["pre0_w"]), pre(s1_ncl, params["pre1_w"])]
    offset = 0
    for _ in range(STEPS):
        acc = jnp.zeros_like(states[0])
        for j in range(len(states)):
            h = states[j]
            e = offset + j
            for prim in _active_prims(mask[e]):
                if prim == 0:
                    continue
                elif prim == 1:
                    acc = acc + _ref_pool3_bn(h, "max")
                elif prim == 2:
                    acc = acc + _ref_pool3_bn(h, "avg")
                elif prim == 3:
                    acc = acc + h
                elif prim in (4, 5):
                    k = 3 if prim == 4 else 5
                    p = params["edges"][e][prim]
                    y = _ref_relu_dw_pw_bn(h, p["dw1"], p["pw1"], k, 1)
                    acc = acc + _ref_relu_dw_pw_bn(y, p["dw2"], p["pw2"], k, 1)
                else:
                    k = 3 if prim == 6 else 5
                    p = params["edges"][e][prim]
                    acc = acc + _ref_relu_dw_pw_bn(h, p["dw"], p["pw"], k, 2)
        offset += len(states)
        states.append(acc)
    out = jnp.concatenate(states[-MULTIPLIER:], axis=-1)
    return jnp.transpose(out, (0, 2, 1))


# ----------------------------------------------------------------------------
if __name__ == "__main__":
    # N*L = 128 -> every resident (C, N*L) state is a fully lane-dense vreg row
    N, C_pp, C_p, C, L = 2, 8, 8, 8, 64
    n_edges = sum(2 + i for i in range(STEPS))   # 14

    # deterministic 14x8 architecture mask (exercises every primitive,
    # a multi-op edge, and an all-zero edge)
    mask_cnn = np.zeros((n_edges, 8), dtype=np.int32)
    for e in range(n_edges):
        mask_cnn[e, e % 8] = 1
    mask_cnn[0, 4] = 1          # edge 0: 'none' + sep_conv_3
    mask_cnn[1, 6] = 1          # edge 1: max_pool_3 + dil_conv_3
    mask_cnn[13, :] = 0         # edge 13: all-zero -> zeros contribution

    key = jax.random.PRNGKey(0)
    key, ks0, ks1, kp = jax.random.split(key, 4)
    s0 = jax.random.normal(ks0, (N, C_pp, L), jnp.float32)   # NCL, like torch
    s1 = jax.random.normal(ks1, (N, C_p, L), jnp.float32)

    params = init_params(kp, mask_cnn, C_pp, C_p, C)

    out = jax.block_until_ready(cnn_cell_forward(s0, s1, mask_cnn, params))
    assert out.shape == (N, MULTIPLIER * C, L), out.shape
    assert bool(jnp.all(jnp.isfinite(out)))

    ref = jax.block_until_ready(_ref_cell_forward(s0, s1, mask_cnn, params))
    err = float(np.max(np.abs(np.asarray(out) - np.asarray(ref))))
    # tolerance allows for MXU matmul-precision differences between the
    # in-kernel dots and the HIGHEST-precision XLA reference einsums
    assert np.allclose(np.asarray(out), np.asarray(ref),
                       rtol=3e-2, atol=3e-2), err

    print("KERNEL_OK")
</pallas_src>

<mosaic_0001>
module attributes {stable_mosaic.version = 11 : i64} {
  func.func @probe(%arg0: memref<8x128xf32, #tpu.memory_space<vmem>>, %arg1: memref<8x128xf32, #tpu.memory_space<vmem>>) attributes {dimension_semantics = [], scalar_prefetch = 0 : i64, scratch_operands = 0 : i64, tpu.core_type = #tpu.core_type<tc>} {
    %c0 = arith.constant 0 : index
    %c0_0 = arith.constant 0 : index
    %0 = vector.load %arg0[%c0, %c0_0] : memref<8x128xf32, #tpu.memory_space<vmem>>, vector<8x128xf32>
    %c1_i32 = arith.constant 1 : i32
    %1 = tpu.dynamic_rotate %0 by %c1_i32 dim 1 : vector<8x128xf32>, i32 -> vector<8x128xf32>
    %c0_1 = arith.constant 0 : index
    %c0_2 = arith.constant 0 : index
    %2 = vector.load %arg1[%c0_1, %c0_2] : memref<8x128xf32, #tpu.memory_space<vmem>>, vector<8x128xf32>
    tpu.vector_store %arg1[%c0_1, %c0_2], %1 {strides = array<i32>} : memref<8x128xf32, #tpu.memory_space<vmem>>, vector<8x128xf32>,
    return
  }
}

</mosaic_0001>

<llo_original>
// kernel: tpu_custom_call.1
$region0: #{tpu_custom_call.1}
  #allocation0 [shape = 'u32[]', space=smem, size = 0x4, offset = 0x4, fixed_abs, tag = 'smem constant byte address 0x4 - core index']
  #allocation1 [shape = 'u32[144,128]{1,0:T(1,128)}', space=vmem, size = 0x12000, scoped, tag = 'internal scratch']
  %s0 = inlined_call_operand.hbm [shape: f32[8,128], index: 0, kind: input, shape index: {}]
  %s1 = inlined_call_operand.hbm [shape: f32[8,128], index: 1, kind: output, shape index: {}]
  %s2 = sld [smem:[#allocation0]]
  $region18: #{tpu_custom_call.1} parent=0
    _
  %s4 = ssub.s32 1, %s2
  %s5 = scalar_select 0, %s4, %s2
  $region1: #{tpu_custom_call.1} parent=0
    #allocation2 [shape = 'u8[4096]{0}', space=vmem, size = 0x1000, scoped, tag = 'input window, operand 0, single buffered']
    #allocation3 [shape = 's32[1]{0}', space=sflag, size = 0x4, scoped, tag = 'scoped memory for tpu_custom_call.1']
    #allocation4 [shape = 's32[1]{0}', space=sflag, size = 0x4, scoped, tag = 'scoped memory for tpu_custom_call.1']
    #allocation5 [shape = 'u8[4096]{0}', space=vmem, size = 0x1000, scoped, tag = 'output window, operand 0, single buffered']
    %6 = vsyncpa [#allocation3], 0
    %7 = vsyncpa [#allocation4], 0
    // Predicated region
    $region2: #{tpu_custom_call.1} parent=1 // pred_check
      _
    $region3: #{tpu_custom_call.1} parent=1 // pred_check_branch
      %9 = sbr.rel (0) target = $region5
    $region4: #{tpu_custom_call.1} parent=1 // pred_region
      %s11 = ssub.s32 128, 128
      %12 = vsyncadd [#allocation3], %s11
      %s14 = sshll.u32 [#allocation2], 4
      %s15 = int_to_ptr.vmem [resolvable:$true] %s14
      %17 = dma.hbm_to_vmem [thread:$0]  %s0, 128, %s15, [#allocation3]
    $region5: #{tpu_custom_call.1} parent=1 // pred_fallthru
      _
    // Predicated region
    $region6: #{tpu_custom_call.1} parent=1 // pred_check
      _
    $region7: #{tpu_custom_call.1} parent=1 // pred_check_branch
      %19 = sbr.rel (0) target = $region9
    $region8: #{tpu_custom_call.1} parent=1 // pred_region
      %20 = dma.done [#allocation3], 128
    $region9: #{tpu_custom_call.1} parent=1 // pred_fallthru
      _
    %v21 = vld [vmem:[#allocation2] sm:$0xff]
    %22 = vrot.lane.b32.xlu0 %v21, 1
    %v23 = vpop.permute.xlu0 %22
    %24 = vst [vmem:[#allocation5] sm:$0xff] %v23
    // Predicated region
    $region10: #{tpu_custom_call.1} parent=1 // pred_check
      _
    $region11: #{tpu_custom_call.1} parent=1 // pred_check_branch
      %26 = sbr.rel (0) target = $region13
    $region12: #{tpu_custom_call.1} parent=1 // pred_region
      %s28 = ssub.s32 128, 128
      %29 = vsyncadd [#allocation4], %s28
      %s31 = sshll.u32 [#allocation5], 4
      %s32 = int_to_ptr.vmem [resolvable:$true] %s31
      %34 = dma.vmem_to_hbm [thread:$0]  %s32, 128, %s1, [#allocation4]
    $region13: #{tpu_custom_call.1} parent=1 // pred_fallthru
      _
    // Predicated region
    $region14: #{tpu_custom_call.1} parent=1 // pred_check
      _
    $region15: #{tpu_custom_call.1} parent=1 // pred_check_branch
      %36 = sbr.rel (0) target = $region17
    $region16: #{tpu_custom_call.1} parent=1 // pred_region
      %37 = dma.done [#allocation4], 128
    $region17: #{tpu_custom_call.1} parent=1 // pred_fallthru
      _
    %38 = vsyncpa [#allocation3], 1
    %39 = vsyncpa [#allocation4], 1

</llo_original>
